<compile_context>
chip_gen: v6e
topology: v6e:2x2x1
jax: 0.10.0
libtpu: 0.0.40
codegen_flags: <defaults>
</compile_context>

<pallas_src>
import functools

import jax
import jax.numpy as jnp
from jax.experimental import pallas as pl
from jax.experimental.pallas import tpu as pltpu


def _cdiv(a, b):
    return -(-a // b)


# ----------------------------------------------------------------------------- kernels

def _accumulate_tile(noise_ref, pred_ref, acc_ref, i, j, *, B, L, TB, TL,
                     mask_rows, mask_cols, w=None):
    """Compute the (masked, optionally weighted) squared error of one tile and
    add it into the resident VMEM accumulator."""
    noise = noise_ref[...].astype(jnp.float32)
    pred = pred_ref[...].astype(jnp.float32)
    diff = noise - pred
    contrib = diff * diff
    if w is not None:
        contrib = contrib * w          # (1, TL) broadcast over the TB rows

    if mask_rows or mask_cols:
        m = None
        if mask_rows:
            rows = jax.lax.broadcasted_iota(jnp.int32, (TB, TL), 0) + i * TB
            m = rows < B
        if mask_cols:
            cols = jax.lax.broadcasted_iota(jnp.int32, (TB, TL), 1) + j * TL
            cm = cols < L
            m = cm if m is None else (m & cm)
        contrib = jnp.where(m, contrib, 0.0)

    acc_ref[...] += contrib


def _weighted_mse_kernel(noise_ref, pred_ref, w_ref, out_ref, acc_ref, *,
                         B, L, TB, TL, mask_rows, mask_cols):
    j = pl.program_id(0)   # column tile (outer -> weight block stays resident)
    i = pl.program_id(1)   # row tile (inner)

    @pl.when((j == 0) & (i == 0))
    def _init():
        acc_ref[...] = jnp.zeros_like(acc_ref)

    _accumulate_tile(noise_ref, pred_ref, acc_ref, i, j,
                     B=B, L=L, TB=TB, TL=TL,
                     mask_rows=mask_rows, mask_cols=mask_cols,
                     w=w_ref[...])

    @pl.when((j == pl.num_programs(0) - 1) & (i == pl.num_programs(1) - 1))
    def _finalize():
        # 1/B is already folded into the weight row on the host side.
        out_ref[0, 0] = jnp.sum(acc_ref[...])


def _mean_mse_kernel(noise_ref, pred_ref, out_ref, acc_ref, *,
                     B, L, TB, TL, mask_rows, mask_cols, scale):
    j = pl.program_id(0)
    i = pl.program_id(1)

    @pl.when((j == 0) & (i == 0))
    def _init():
        acc_ref[...] = jnp.zeros_like(acc_ref)

    _accumulate_tile(noise_ref, pred_ref, acc_ref, i, j,
                     B=B, L=L, TB=TB, TL=TL,
                     mask_rows=mask_rows, mask_cols=mask_cols,
                     w=None)

    @pl.when((j == pl.num_programs(0) - 1) & (i == pl.num_programs(1) - 1))
    def _finalize():
        out_ref[0, 0] = jnp.sum(acc_ref[...]) * jnp.float32(scale)


# ----------------------------------------------------------------------------- wrapper

_MAX_TB = 512    # rows per tile   (512 x 2048 f32 = 4 MiB per input tile)
_MAX_TL = 2048   # cols per tile


def _make_loss_weight(rir_len, kind):
    if kind is None:
        return None
    if kind == "linear":
        w = jnp.linspace(1.0, 0.0, rir_len, dtype=jnp.float32)
    elif kind == "log":
        w = jnp.log(jnp.linspace(float(rir_len), 1.0, rir_len, dtype=jnp.float32))
    else:
        raise ValueError(f"unknown loss_weight kind: {kind}")
    return w / jnp.sum(w)


class Loss:
    """JAX/Pallas port of the PyTorch Loss module (deterministic, no checkpoint)."""

    def __init__(self, rir_len, loss_weight=None):
        self.rir_len = rir_len
        self.loss_weight = _make_loss_weight(rir_len, loss_weight)

    def __call__(self, noise, predicted):
        # noise:     (B, L)
        # predicted: (B, 1, L)  -> squeeze(1) as in the PyTorch module
        B, L = noise.shape
        pred = jnp.squeeze(predicted, axis=1)   # no upcast; kernel casts per-tile

        # Tile selection: use the full dim when small (exempt from (8,128) rule),
        # otherwise a capped multiple of (8 / 128) with in-kernel masking for the
        # partial trailing tile.
        TB = B if B <= _MAX_TB else _MAX_TB
        TL = L if L <= _MAX_TL else _MAX_TL
        nb = _cdiv(B, TB)
        nl = _cdiv(L, TL)
        mask_rows = (B % TB) != 0
        mask_cols = (L % TL) != 0

        out_shape = jax.ShapeDtypeStruct((1, 1), jnp.float32)
        scratch = [pltpu.VMEM((TB, TL), jnp.float32)]   # resident accumulator
        compiler_params = pltpu.CompilerParams(
            dimension_semantics=("arbitrary", "arbitrary"),  # both axes feed one acc
            vmem_limit_bytes=32 * 1024 * 1024,               # fits v5e/v6e/v7x
        )
        out_spec = pl.BlockSpec((1, 1), lambda j, i: (0, 0),
                                memory_space=pltpu.MemorySpace.SMEM)

        common = dict(B=B, L=L, TB=TB, TL=TL,
                      mask_rows=mask_rows, mask_cols=mask_cols)

        if self.loss_weight is not None:
            # fold the 1/batch factor into the (sum-normalized) weight row
            w = (self.loss_weight / jnp.float32(B)).reshape(1, L)
            kernel = functools.partial(_weighted_mse_kernel, **common)
            out = pl.pallas_call(
                kernel,
                out_shape=out_shape,
                grid=(nl, nb),
                in_specs=[
                    pl.BlockSpec((TB, TL), lambda j, i: (i, j)),
                    pl.BlockSpec((TB, TL), lambda j, i: (i, j)),
                    pl.BlockSpec((1, TL), lambda j, i: (0, j)),  # resident per col tile
                ],
                out_specs=out_spec,
                scratch_shapes=scratch,
                compiler_params=compiler_params,
            )(noise, pred, w)
        else:
            # plain mean: no weight input at all, fold 1/(B*L) into the epilogue
            kernel = functools.partial(_mean_mse_kernel, scale=1.0 / (B * L), **common)
            out = pl.pallas_call(
                kernel,
                out_shape=out_shape,
                grid=(nl, nb),
                in_specs=[
                    pl.BlockSpec((TB, TL), lambda j, i: (i, j)),
                    pl.BlockSpec((TB, TL), lambda j, i: (i, j)),
                ],
                out_specs=out_spec,
                scratch_shapes=scratch,
                compiler_params=compiler_params,
            )(noise, pred)

        return out[0, 0]


# TODO(synk): optional v7x 2-TensorCore split of the row-tile axis (2 partial sums
# combined in the wrapper) is not implemented; single-core reduction is used.


if __name__ == "__main__":
    key = jax.random.PRNGKey(0)
    B, rir_len = 2, 256
    k1, k2 = jax.random.split(key)
    noise = jax.random.normal(k1, (B, rir_len), dtype=jnp.float32)
    predicted = jax.random.normal(k2, (B, 1, rir_len), dtype=jnp.float32)

    # f32 inputs, all weight kinds
    for kind in ("linear", "log", None):
        loss_mod = Loss(rir_len, loss_weight=kind)
        out = loss_mod(noise, predicted)
        jax.block_until_ready(out)

        sq = (noise - jnp.squeeze(predicted, axis=1)) ** 2
        if kind is None:
            ref = jnp.mean(sq)
        else:
            ref = jnp.sum(sq * loss_mod.loss_weight) / B
        assert jnp.allclose(out, ref, rtol=1e-5, atol=1e-6), (kind, float(out), float(ref))

    # bf16 inputs (native-dtype DMA, in-kernel f32 cast)
    noise_bf = noise.astype(jnp.bfloat16)
    predicted_bf = predicted.astype(jnp.bfloat16)
    loss_mod = Loss(rir_len, loss_weight="linear")
    out_bf = loss_mod(noise_bf, predicted_bf)
    jax.block_until_ready(out_bf)
    sq_bf = (noise_bf.astype(jnp.float32)
             - jnp.squeeze(predicted_bf, axis=1).astype(jnp.float32)) ** 2
    ref_bf = jnp.sum(sq_bf * loss_mod.loss_weight) / B
    assert jnp.allclose(out_bf, ref_bf, rtol=1e-5, atol=1e-6), (float(out_bf), float(ref_bf))

    print("KERNEL_OK")
</pallas_src>

<mosaic_0001>
module attributes {stable_mosaic.version = 11 : i64} {
  func.func @_weighted_mse_kernel(%arg0: i32, %arg1: i32, %arg2: memref<2x256xf32, #tpu.memory_space<vmem>>, %arg3: memref<2x256xf32, #tpu.memory_space<vmem>>, %arg4: memref<1x256xf32, #tpu.memory_space<vmem>>, %arg5: memref<1x1xf32, #tpu.memory_space<smem>>, %arg6: memref<2x256xf32, #tpu.memory_space<vmem>>) attributes {dimension_semantics = [#tpu.dimension_semantics<arbitrary>, #tpu.dimension_semantics<arbitrary>], iteration_bounds = array<i64: 1, 1>, scalar_prefetch = 0 : i64, scratch_operands = 1 : i64, tpu.core_type = #tpu.core_type<tc>, window_params = [{transform_indices = @transform_0, window_bounds = array<i64: 2, 256>}, {transform_indices = @transform_1, window_bounds = array<i64: 2, 256>}, {transform_indices = @transform_2, window_bounds = array<i64: 1, 256>}, {transform_indices = @transform_3, window_bounds = array<i64: 1, 1>}]} {
    %c0_i32 = arith.constant 0 : i32
    %0 = arith.cmpi eq, %arg0, %c0_i32 : i32
    %c0_i32_0 = arith.constant 0 : i32
    %1 = arith.cmpi eq, %arg1, %c0_i32_0 : i32
    %2 = arith.andi %0, %1 : i1
    %3 = arith.extui %2 : i1 to i32
    %c0_i32_1 = arith.constant 0 : i32
    %4 = arith.cmpi ne, %3, %c0_i32_1 : i32
    scf.if %4 {
      %cst = arith.constant 0.000000e+00 : f32
      %20 = vector.broadcast %cst : f32 to vector<2x256xf32>
      %c0_14 = arith.constant 0 : index
      %c0_15 = arith.constant 0 : index
      %21 = vector.load %arg6[%c0_14, %c0_15] : memref<2x256xf32, #tpu.memory_space<vmem>>, vector<2x256xf32>
      tpu.vector_store %arg6[%c0_14, %c0_15], %20 {strides = array<i32>} : memref<2x256xf32, #tpu.memory_space<vmem>>, vector<2x256xf32>,
    } else {
    }
    %c0 = arith.constant 0 : index
    %c0_2 = arith.constant 0 : index
    %5 = vector.load %arg4[%c0, %c0_2] : memref<1x256xf32, #tpu.memory_space<vmem>>, vector<1x256xf32>
    %c0_3 = arith.constant 0 : index
    %c0_4 = arith.constant 0 : index
    %6 = vector.load %arg2[%c0_3, %c0_4] : memref<2x256xf32, #tpu.memory_space<vmem>>, vector<2x256xf32>
    %c0_5 = arith.constant 0 : index
    %c0_6 = arith.constant 0 : index
    %7 = vector.load %arg3[%c0_5, %c0_6] : memref<2x256xf32, #tpu.memory_space<vmem>>, vector<2x256xf32>
    %8 = arith.subf %6, %7 : vector<2x256xf32>
    %9 = arith.mulf %8, %8 : vector<2x256xf32>
    %10 = vector.broadcast %5 : vector<1x256xf32> to vector<2x256xf32>
    %11 = arith.mulf %9, %10 : vector<2x256xf32>
    %c0_7 = arith.constant 0 : index
    %c0_8 = arith.constant 0 : index
    %12 = vector.load %arg6[%c0_7, %c0_8] : memref<2x256xf32, #tpu.memory_space<vmem>>, vector<2x256xf32>
    %13 = arith.addf %12, %11 : vector<2x256xf32>
    %c0_9 = arith.constant 0 : index
    %c0_10 = arith.constant 0 : index
    %14 = vector.load %arg6[%c0_9, %c0_10] : memref<2x256xf32, #tpu.memory_space<vmem>>, vector<2x256xf32>
    tpu.vector_store %arg6[%c0_9, %c0_10], %13 {strides = array<i32>} : memref<2x256xf32, #tpu.memory_space<vmem>>, vector<2x256xf32>,
    %c0_i32_11 = arith.constant 0 : i32
    %15 = arith.cmpi eq, %arg0, %c0_i32_11 : i32
    %c0_i32_12 = arith.constant 0 : i32
    %16 = arith.cmpi eq, %arg1, %c0_i32_12 : i32
    %17 = arith.andi %15, %16 : i1
    %18 = arith.extui %17 : i1 to i32
    %c0_i32_13 = arith.constant 0 : i32
    %19 = arith.cmpi ne, %18, %c0_i32_13 : i32
    scf.if %19 {
      %c0_14 = arith.constant 0 : index
      %c0_15 = arith.constant 0 : index
      %20 = vector.load %arg6[%c0_14, %c0_15] : memref<2x256xf32, #tpu.memory_space<vmem>>, vector<2x256xf32>
      %21 = vector.shape_cast %20 : vector<2x256xf32> to vector<1x2x256xf32>
      %cst = arith.constant dense<0.000000e+00> : vector<1xf32>
      %22 = vector.multi_reduction <add>, %21, %cst [1, 2] : vector<1x2x256xf32> to vector<1xf32>
      %23 = vector.shape_cast %22 : vector<1xf32> to vector<1x1x1xf32>
      %24 = vector.extract %23[0, 0, 0] : f32 from vector<1x1x1xf32>
      %c0_16 = arith.constant 0 : index
      %c0_17 = arith.constant 0 : index
      %25 = memref.load %arg5[%c0_16, %c0_17] : memref<1x1xf32, #tpu.memory_space<smem>>
      memref.store %24, %arg5[%c0_16, %c0_17] : memref<1x1xf32, #tpu.memory_space<smem>>
    } else {
    }
    return
  }
  func.func @transform_0(%arg0: i32, %arg1: i32) -> (i32, i32) {
    %c0_i32 = arith.constant 0 : i32
    return %arg1, %arg0 : i32, i32
  }
  func.func @transform_1(%arg0: i32, %arg1: i32) -> (i32, i32) {
    %c0_i32 = arith.constant 0 : i32
    return %arg1, %arg0 : i32, i32
  }
  func.func @transform_2(%arg0: i32, %arg1: i32) -> (i32, i32) {
    %c0_i32 = arith.constant 0 : i32
    %c0_i32_0 = arith.constant 0 : i32
    return %c0_i32, %arg0 : i32, i32
  }
  func.func @transform_3(%arg0: i32, %arg1: i32) -> (i32, i32) {
    %c0_i32 = arith.constant 0 : i32
    %c0_i32_0 = arith.constant 0 : i32
    %c0_i32_1 = arith.constant 0 : i32
    return %c0_i32, %c0_i32_0 : i32, i32
  }
}

</mosaic_0001>

<llo_original>
// kernel: tpu_custom_call.1
$region0: #{tpu_custom_call.1}
  #allocation0 [shape = 'u32[]', space=smem, size = 0x4, offset = 0x4, fixed_abs, tag = 'smem constant byte address 0x4 - core index']
  #allocation1 [shape = 'u32[144,128]{1,0:T(1,128)}', space=vmem, size = 0x12000, scoped, tag = 'internal scratch']
  #allocation2 [shape = 'f32[2,256]{1,0:T(2,128)}', space=vmem, size = 0x800, scoped, tag = 'scratch operand']
  %s0 = inlined_call_operand.hbm [shape: f32[2,256], index: 0, kind: input, shape index: {}]
  %s1 = inlined_call_operand.hbm [shape: f32[2,256], index: 1, kind: input, shape index: {}]
  %s2 = inlined_call_operand.vmem [shape: f32[1,256], index: 2, kind: input, shape index: {}]
  %s3 = inlined_call_operand.hbm [shape: f32[1,1], index: 3, kind: output, shape index: {}]
  %s4 = sld [smem:[#allocation0]]
  $region38: #{tpu_custom_call.1} parent=0
    _
  %s6 = ssub.s32 1, %s4
  %s7 = scalar_select 0, %s6, %s4
  $region1: #{tpu_custom_call.1} parent=0
    #allocation3 [shape = 'u8[2048]{0}', space=vmem, size = 0x800, scoped, tag = 'input window, operand 0, single buffered']
    #allocation4 [shape = 's32[1]{0}', space=sflag, size = 0x4, scoped, tag = 'scoped memory for tpu_custom_call.1']
    #allocation5 [shape = 's32[1]{0}', space=sflag, size = 0x4, scoped, tag = 'scoped memory for tpu_custom_call.1']
    #allocation6 [shape = 'u8[2048]{0}', space=vmem, size = 0x800, scoped, tag = 'input window, operand 1, single buffered']
    #allocation7 [shape = 's32[1]{0}', space=sflag, size = 0x4, scoped, tag = 'scoped memory for tpu_custom_call.1']
    #allocation8 [shape = 'u8[512]{0}', space=smem, size = 0x200, scoped, tag = 'output window, operand 0, single buffered']
    %8 = vsyncpa [#allocation4], 0
    %9 = vsyncpa [#allocation7], 0
    %10 = vsyncpa [#allocation5], 0
    // Predicated region
    $region2: #{tpu_custom_call.1} parent=1 // pred_check
      _
    $region3: #{tpu_custom_call.1} parent=1 // pred_check_branch
      %12 = sbr.rel (0) target = $region5
    $region4: #{tpu_custom_call.1} parent=1 // pred_region
      %s14 = ssub.s32 64, 64
      %15 = vsyncadd [#allocation4], %s14
      %s17 = sshll.u32 [#allocation3], 4
      %s18 = int_to_ptr.vmem [resolvable:$true] %s17
      %20 = dma.hbm_to_vmem [thread:$0]  %s0, 64, %s18, [#allocation4]
    $region5: #{tpu_custom_call.1} parent=1 // pred_fallthru
      _
    // Predicated region
    $region6: #{tpu_custom_call.1} parent=1 // pred_check
      _
    $region7: #{tpu_custom_call.1} parent=1 // pred_check_branch
      %22 = sbr.rel (0) target = $region9
    $region8: #{tpu_custom_call.1} parent=1 // pred_region
      %s24 = ssub.s32 64, 64
      %25 = vsyncadd [#allocation7], %s24
      %s27 = sshll.u32 [#allocation6], 4
      %s28 = int_to_ptr.vmem [resolvable:$true] %s27
      %30 = dma.hbm_to_vmem [thread:$0]  %s1, 64, %s28, [#allocation7]
    $region9: #{tpu_custom_call.1} parent=1 // pred_fallthru
      _
    // Predicated region
    $region10: #{tpu_custom_call.1} parent=1 // pred_check
      _
    $region11: #{tpu_custom_call.1} parent=1 // pred_check_branch
      %32 = sbr.rel (0) target = $region13
    $region12: #{tpu_custom_call.1} parent=1 // pred_region
      _
    $region13: #{tpu_custom_call.1} parent=1 // pred_fallthru
      _
    // Predicated region
    $region14: #{tpu_custom_call.1} parent=1 // pred_check
      _
    $region15: #{tpu_custom_call.1} parent=1 // pred_check_branch
      %34 = sbr.rel (0) target = $region17
    $region16: #{tpu_custom_call.1} parent=1 // pred_region
      %35 = dma.done [#allocation4], 64
    $region17: #{tpu_custom_call.1} parent=1 // pred_fallthru
      _
    // Predicated region
    $region18: #{tpu_custom_call.1} parent=1 // pred_check
      _
    $region19: #{tpu_custom_call.1} parent=1 // pred_check_branch
      %37 = sbr.rel (0) target = $region21
    $region20: #{tpu_custom_call.1} parent=1 // pred_region
      %38 = dma.done [#allocation7], 64
    $region21: #{tpu_custom_call.1} parent=1 // pred_fallthru
      _
    %p39 = scmp.eq.s32.totalorder 0, 0
    %p40 = scmp.eq.s32.totalorder 0, 0
    %p41 = pnand %p39, %p40
    %p42 = pneg %p41
    // Predicated region
    $region22: #{tpu_custom_call.1} parent=1 // pred_check
      _
    $region23: #{tpu_custom_call.1} parent=1 // pred_check_branch
      %44 = sbr.rel (%p41) target = $region25
    $region24: #{tpu_custom_call.1} parent=1 // pred_region
      %45 = vst [vmem:[#allocation2] sm:$0xf] 0.0
    $region25: #{tpu_custom_call.1} parent=1 // pred_fallthru
      _
    %v46 = vld [vmem:[%s2] sm:$0x3]
    %v47 = vld [vmem:[#allocation3] sm:$0xf]
    %v48 = vld [vmem:[#allocation6] sm:$0xf]
    %v49 = vsub.f32 %v47, %v48
    %v50 = vmul.f32 %v49, %v49
    %v52 = vlaneseq
    %v53 = vshrl.u32 %v52, 7
    %v54 = vsub.s32 0, %v53
    %v55 = vrot.slane %v46, %v54
    %v56 = vlaneseq
    %v57 = vshrl.u32 %v56, 7
    %v58 = vsub.s32 1, %v57
    %v59 = vrot.slane %v46, %v58
    %v60 = vcombine.low %v55, %v59
    %v62 = vunpack.c.l.s4 1983009808
    %v63 = vunpack.c.0.s8 %v62
    %v64 = vlaneseq
    %v65 = vshrl.u32 %v64, 7
    %v66 = vsub.s32 %v63, %v65
    %v67 = vrot.slane %v60, %v66
    %v69 = vmul.f32 %v50, %v67
    %v70 = vld [vmem:[#allocation2] sm:$0xf]
    %v71 = vadd.f32 %v70, %v69
    %72 = vst [vmem:[#allocation2] sm:$0xf] %v71
    // Predicated region
    $region26: #{tpu_custom_call.1} parent=1 // pred_check
      _
    $region27: #{tpu_custom_call.1} parent=1 // pred_check_branch
      %74 = sbr.rel (%p41) target = $region29
    $region28: #{tpu_custom_call.1} parent=1 // pred_region
      %v75 = vld [vmem:[#allocation2] sm:$0xf]
      %v78 = vunpack.c.l.s4 1983009808
      %v79 = vunpack.c.0.s8 %v78
      %v80 = vlaneseq
      %v81 = vshrl.u32 %v80, 7
      %v82 = vsub.s32 %v79, %v81
      %v83 = vrot.slane %v75, %v82
      %v84 = vcombine.high %v83, %v83
      %vm87 = vcmask 1041408
      %v88 = vsel %vm87, %v83, 0.0
      %v89 = vsel %vm87, %v84, 0.0
      %v90 = vadd.f32 %v88, %v89
      %91 = vadd.xlane.f32.xlu0 %v90
      %v92 = vpop.xlane.xlu0 %91
      %v93 = vrot.slane %v92, 4
      %v94 = vadd.f32 %v92, %v93
      %v95 = vrot.slane %v94, 2
      %v96 = vadd.f32 %v94, %v95
      %v97 = vrot.slane %v96, 1
      %v98 = vadd.f32 %v96, %v97
      %s99 = vtos %v98
      %s100 = scalar_lea.smem [#allocation8], 0
      %101 = sst [smem:[%s100]] %s99
    $region29: #{tpu_custom_call.1} parent=1 // pred_fallthru
      _
    // Predicated region
    $region30: #{tpu_custom_call.1} parent=1 // pred_check
      _
    $region31: #{tpu_custom_call.1} parent=1 // pred_check_branch
      %103 = sbr.rel (0) target = $region33
    $region32: #{tpu_custom_call.1} parent=1 // pred_region
      %s105 = ssub.s32 16, 16
      %106 = vsyncadd [#allocation5], %s105
      %109 = dma.smem_to_hbm [#allocation8], 16, %s3, [#allocation5]
    $region33: #{tpu_custom_call.1} parent=1 // pred_fallthru
      _
    // Predicated region
    $region34: #{tpu_custom_call.1} parent=1 // pred_check
      _
    $region35: #{tpu_custom_call.1} parent=1 // pred_check_branch
      %111 = sbr.rel (0) target = $region37
    $region36: #{tpu_custom_call.1} parent=1 // pred_region
      %112 = dma.done [#allocation5], 16
    $region37: #{tpu_custom_call.1} parent=1 // pred_fallthru
      _
    %113 = sfence
    %114 = vsyncpa [#allocation4], 1
    %115 = vsyncpa [#allocation7], 1
    %116 = vsyncpa [#allocation5], 1

</llo_original>
